<compile_context>
chip_gen: v5e
topology: v5e:2x2
jax: 0.10.0
libtpu: 0.0.40
codegen_flags: <defaults>
</compile_context>

<pallas_src>
import functools

import jax
import jax.numpy as jnp
from jax.experimental import pallas as pl
from jax.experimental.pallas import tpu as pltpu

BN_EPS = 1e-5


def ge_kernel(x_ref, w1g_ref, b1_ref, w2_ref, b2_ref, o_ref, *, chunk):
    """One grid step: a block of samples, processed `chunk` samples at a time.

    x_ref   : (Bb, C, HW)   input block (lanes = HW, sublanes = C)
    w1g_ref : (Cb, C, HW)   folded gather_conv * bn_scale * mlp_w1 maps
    b1_ref  : (Cb,)  SMEM   folded first-layer bias (incl. BN shift term)
    w2_ref  : (Cb, C, 1)    columns of the second 1x1 conv weight
    b2_ref  : (C, 1)        second 1x1 conv bias
    o_ref   : (Bb, C, HW)   gated output block
    """
    Bb = x_ref.shape[0]
    Cb = w1g_ref.shape[0]

    # Loop-invariant loads / broadcasts hoisted above the unrolled chunk loop
    # (w1g is Cb*C*HW*4 = 64 KiB = 16 vregs for the default config).
    w1g = [w1g_ref[k][None] for k in range(Cb)]          # each (1, C, HW)
    w2c = [w2_ref[k][None] for k in range(Cb)]           # each (1, C, 1)
    b1s = [b1_ref[k] for k in range(Cb)]                 # SMEM scalars
    b2 = b2_ref[...][None]                               # (1, C, 1)

    for c0 in range(0, Bb, chunk):                       # static unroll over chunks
        cs = min(chunk, Bb - c0)
        sl = pl.ds(c0, cs)

        # Single VMEM->vreg pass over the chunk, reused for excite + gate.
        xc = x_ref[sl]                                   # (cs, C, HW)

        # excite: a[b,c] = b2[c] + sum_k w2[c,k] * relu(<x[b], W1g[k]> + b1[k])
        a = b2
        for k in range(Cb):                              # Cb is tiny (2)
            prod = xc * w1g[k]                           # (cs, C, HW)   VPU
            hk = jnp.sum(prod, axis=-1, keepdims=True)   # (cs, C, 1)    lane reduce
            hk = jnp.sum(hk, axis=1, keepdims=True)      # (cs, 1, 1)    sublane reduce
            hk = jnp.maximum(hk + b1s[k], 0.0)           # ReLU
            a = a + hk * w2c[k]                          # (cs, C, 1)

        # interpolate(nearest) from 1x1 == broadcast over HW; sigmoid; gate.
        o_ref[sl] = xc * jax.nn.sigmoid(a)               # (cs, C, HW)


def ge_params_plus(x_nchw, params, *, batch_block=128, sample_chunk=4):
    """Forward pass of GEParamsPlus (extent=0). x_nchw: (N, C, H, W) float32."""
    N, C, H, W = x_nchw.shape
    HW = H * W
    Cb = params["w1"].shape[0]

    # --- native layout: just a reshape of NCHW (no HBM transpose passes) ---
    x = x_nchw.reshape(N, C, HW)                                 # (N, C, HW)

    # --- fold gather conv + BN(inference) + first 1x1 conv (exact f32) ---
    gw = params["gather_w"].reshape(C, HW)                       # (C, HW)
    inv_std = 1.0 / jnp.sqrt(params["bn_var"] + BN_EPS)          # (C,)
    bn_scale = params["bn_gamma"] * inv_std                      # (C,)
    bn_shift = params["bn_beta"] - params["bn_mean"] * bn_scale  # (C,)
    w1 = params["w1"].reshape(Cb, C)                             # (Cb, C)
    w1g = (w1 * bn_scale[None, :])[:, :, None] * gw[None, :, :]  # (Cb, C, HW)
    b1_eff = params["b1"] + jnp.sum(w1 * bn_shift[None, :], axis=1)   # (Cb,)
    w2cols = params["w2"].reshape(C, Cb).T[:, :, None]           # (Cb, C, 1)
    b2col = params["b2"].reshape(C, 1)                           # (C, 1)

    # --- batch tiling ---
    Bb = min(batch_block, N)
    # v7x has 2 TensorCores: prefer >=2 grid steps (when N is non-trivial) so
    # the "parallel" batch axis can shard across both cores.
    if pl.cdiv(N, Bb) < 2 and N >= 2 * sample_chunk:
        Bb = pl.cdiv(N, 2)
    chunk = min(sample_chunk, Bb)

    # Pad the batch to a multiple of Bb so the last block never depends on
    # out-of-bounds read/writeback masking.
    Np = pl.cdiv(N, Bb) * Bb
    if Np != N:
        x = jnp.pad(x, ((0, Np - N), (0, 0), (0, 0)))
    grid = (Np // Bb,)

    # Scoped-VMEM budget: double-buffered in + out blocks plus weight blocks.
    itemsize = 4
    block_bytes = Bb * C * HW * itemsize
    weight_bytes = Cb * C * HW * itemsize + Cb * C * itemsize + C * itemsize
    vmem_needed = 2 * (2 * block_bytes + weight_bytes) + (1 << 20)     # 1 MiB slack
    vmem_limit = max(min(vmem_needed, 48 << 20), 16 << 20)             # v7x-safe cap

    kernel = functools.partial(ge_kernel, chunk=chunk)

    out = pl.pallas_call(
        kernel,
        out_shape=jax.ShapeDtypeStruct((Np, C, HW), x.dtype),
        grid=grid,
        in_specs=[
            pl.BlockSpec((Bb, C, HW), lambda i: (i, 0, 0)),      # x block
            pl.BlockSpec((Cb, C, HW), lambda i: (0, 0, 0)),      # folded gather maps
            pl.BlockSpec(memory_space=pltpu.MemorySpace.SMEM),   # b1_eff scalars
            pl.BlockSpec((Cb, C, 1), lambda i: (0, 0, 0)),       # w2 columns
            pl.BlockSpec((C, 1), lambda i: (0, 0)),              # b2
        ],
        out_specs=pl.BlockSpec((Bb, C, HW), lambda i: (i, 0, 0)),
        compiler_params=pltpu.CompilerParams(
            dimension_semantics=("parallel",),
            vmem_limit_bytes=int(vmem_limit)),
    )(x, w1g, b1_eff, w2cols, b2col)

    return out[:N].reshape(N, C, H, W)


def ge_reference(x_nchw, params):
    """Pure-JAX reference mirroring the PyTorch forward (eval-mode BN).

    Uses explicit broadcast-multiply + sums (exact f32) so it is not affected
    by the TPU default matmul precision.
    """
    N, C, H, W = x_nchw.shape
    gw = params["gather_w"][:, 0]                                # (C, H, W)
    g = jnp.sum(x_nchw * gw[None], axis=(2, 3))                  # (N, C)
    inv_std = 1.0 / jnp.sqrt(params["bn_var"] + BN_EPS)
    g = (g - params["bn_mean"]) * inv_std * params["bn_gamma"] + params["bn_beta"]
    Cb = params["w1"].shape[0]
    w1 = params["w1"].reshape(Cb, C)                             # (Cb, C)
    w2 = params["w2"].reshape(C, Cb)                             # (C, Cb)
    h = jnp.maximum(jnp.sum(g[:, None, :] * w1[None], axis=-1) + params["b1"], 0.0)
    a = jnp.sum(h[:, None, :] * w2[None], axis=-1) + params["b2"]
    att = jax.nn.sigmoid(a)[:, :, None, None]                    # (N, C, 1, 1)
    return att * x_nchw                                          # nearest-interp == broadcast


def init_params(key, in_dim, bottleneck_dim, spatial_dim):
    ks = jax.random.split(key, 8)
    H = W = spatial_dim
    return {
        # gather: depthwise conv weight (C, 1, H, W), no bias
        "gather_w": jax.random.normal(ks[0], (in_dim, 1, H, W), jnp.float32) * 0.05,
        # BatchNorm2d(in_dim) — inference-mode parameters
        "bn_gamma": jax.random.normal(ks[1], (in_dim,), jnp.float32) * 0.1 + 1.0,
        "bn_beta": jax.random.normal(ks[2], (in_dim,), jnp.float32) * 0.1,
        "bn_mean": jax.random.normal(ks[3], (in_dim,), jnp.float32) * 0.1,
        "bn_var": jnp.abs(jax.random.normal(ks[4], (in_dim,), jnp.float32)) * 0.1 + 1.0,
        # mlp: Conv2d(C, Cb, 1) , Conv2d(Cb, C, 1)
        "w1": jax.random.normal(ks[5], (bottleneck_dim, in_dim, 1, 1), jnp.float32) * 0.1,
        "b1": jax.random.normal(ks[6], (bottleneck_dim,), jnp.float32) * 0.1,
        "w2": jax.random.normal(ks[7], (in_dim, bottleneck_dim, 1, 1), jnp.float32) * 0.1,
        "b2": jnp.zeros((in_dim,), jnp.float32),
    }


if __name__ == "__main__":
    C, H, W = 32, 16, 16                 # in_dim=32, spatial_dim=16
    reduction_factor = 16
    Cb = C // reduction_factor           # bottleneck_dim = 2

    key = jax.random.PRNGKey(0)
    k_x, k_p, k_x2 = jax.random.split(key, 3)
    params = init_params(k_p, C, Cb, H)

    # Check 1: small batch, single grid step.
    N = 2
    x = jax.random.normal(k_x, (N, C, H, W), jnp.float32)
    out = jax.block_until_ready(ge_params_plus(x, params))
    ref = ge_reference(x, params)
    assert out.shape == x.shape
    assert jnp.allclose(out, ref, rtol=1e-4, atol=1e-5), (
        float(jnp.max(jnp.abs(out - ref))))

    # Check 2: ragged batch with multiple grid steps (exercises padding path).
    N2 = 13
    x2 = jax.random.normal(k_x2, (N2, C, H, W), jnp.float32)
    out2 = jax.block_until_ready(
        ge_params_plus(x2, params, batch_block=4, sample_chunk=4))
    ref2 = ge_reference(x2, params)
    assert out2.shape == x2.shape
    assert jnp.allclose(out2, ref2, rtol=1e-4, atol=1e-5), (
        float(jnp.max(jnp.abs(out2 - ref2))))

    print("KERNEL_OK")
</pallas_src>

<mosaic_0001>
module attributes {stable_mosaic.version = 11 : i64} {
  func.func @ge_kernel(%arg0: i32, %arg1: memref<2x32x256xf32, #tpu.memory_space<vmem>>, %arg2: memref<2x32x256xf32, #tpu.memory_space<vmem>>, %arg3: memref<2xf32, #tpu.memory_space<smem>>, %arg4: memref<2x32x1xf32, #tpu.memory_space<vmem>>, %arg5: memref<32x1xf32, #tpu.memory_space<vmem>>, %arg6: memref<2x32x256xf32, #tpu.memory_space<vmem>>) attributes {dimension_semantics = [#tpu.dimension_semantics<parallel>], iteration_bounds = array<i64: 1>, scalar_prefetch = 0 : i64, scratch_operands = 0 : i64, tpu.core_type = #tpu.core_type<tc>, window_params = [{transform_indices = @transform_0, window_bounds = array<i64: 2, 32, 256>}, {pipeline_mode = #tpu.pipeline_mode<synchronous>, transform_indices = @transform_1, window_bounds = array<i64: 2, 32, 256>}, {transform_indices = @transform_2, window_bounds = array<i64: 2>}, {pipeline_mode = #tpu.pipeline_mode<synchronous>, transform_indices = @transform_3, window_bounds = array<i64: 2, 32, 1>}, {pipeline_mode = #tpu.pipeline_mode<synchronous>, transform_indices = @transform_4, window_bounds = array<i64: 32, 1>}, {transform_indices = @transform_5, window_bounds = array<i64: 2, 32, 256>}]} {
    %c0 = arith.constant 0 : index
    %c0_0 = arith.constant 0 : index
    %c0_1 = arith.constant 0 : index
    %0 = vector.load %arg2[%c0, %c0_0, %c0_1] : memref<2x32x256xf32, #tpu.memory_space<vmem>>, vector<1x32x256xf32>
    %1 = vector.shape_cast %0 : vector<1x32x256xf32> to vector<32x256xf32>
    %2 = vector.shape_cast %1 : vector<32x256xf32> to vector<1x32x256xf32>
    %c1 = arith.constant 1 : index
    %c0_2 = arith.constant 0 : index
    %c0_3 = arith.constant 0 : index
    %3 = vector.load %arg2[%c1, %c0_2, %c0_3] : memref<2x32x256xf32, #tpu.memory_space<vmem>>, vector<1x32x256xf32>
    %4 = vector.shape_cast %3 : vector<1x32x256xf32> to vector<32x256xf32>
    %5 = vector.shape_cast %4 : vector<32x256xf32> to vector<1x32x256xf32>
    %c0_4 = arith.constant 0 : index
    %c0_5 = arith.constant 0 : index
    %c0_6 = arith.constant 0 : index
    %6 = vector.load %arg4[%c0_4, %c0_5, %c0_6] : memref<2x32x1xf32, #tpu.memory_space<vmem>>, vector<1x32x1xf32>
    %7 = vector.shape_cast %6 : vector<1x32x1xf32> to vector<32x1xf32>
    %8 = vector.shape_cast %7 : vector<32x1xf32> to vector<1x32x1xf32>
    %c1_7 = arith.constant 1 : index
    %c0_8 = arith.constant 0 : index
    %c0_9 = arith.constant 0 : index
    %9 = vector.load %arg4[%c1_7, %c0_8, %c0_9] : memref<2x32x1xf32, #tpu.memory_space<vmem>>, vector<1x32x1xf32>
    %10 = vector.shape_cast %9 : vector<1x32x1xf32> to vector<32x1xf32>
    %11 = vector.shape_cast %10 : vector<32x1xf32> to vector<1x32x1xf32>
    %c0_10 = arith.constant 0 : index
    %12 = memref.load %arg3[%c0_10] : memref<2xf32, #tpu.memory_space<smem>>
    %c1_11 = arith.constant 1 : index
    %13 = memref.load %arg3[%c1_11] : memref<2xf32, #tpu.memory_space<smem>>
    %c0_12 = arith.constant 0 : index
    %c0_13 = arith.constant 0 : index
    %14 = vector.load %arg5[%c0_12, %c0_13] : memref<32x1xf32, #tpu.memory_space<vmem>>, vector<32x1xf32>
    %15 = vector.shape_cast %14 : vector<32x1xf32> to vector<1x32x1xf32>
    %c0_14 = arith.constant 0 : index
    %c0_15 = arith.constant 0 : index
    %c0_16 = arith.constant 0 : index
    %16 = vector.load %arg1[%c0_14, %c0_15, %c0_16] : memref<2x32x256xf32, #tpu.memory_space<vmem>>, vector<2x32x256xf32>
    %17 = vector.broadcast %2 : vector<1x32x256xf32> to vector<2x32x256xf32>
    %18 = arith.mulf %16, %17 : vector<2x32x256xf32>
    %cst = arith.constant dense<0.000000e+00> : vector<2x32xf32>
    %19 = vector.multi_reduction <add>, %18, %cst [2] : vector<2x32x256xf32> to vector<2x32xf32>
    %20 = vector.shape_cast %19 : vector<2x32xf32> to vector<2x32x1xf32>
    %cst_17 = arith.constant dense<0.000000e+00> : vector<2x1xf32>
    %21 = vector.multi_reduction <add>, %20, %cst_17 [1] : vector<2x32x1xf32> to vector<2x1xf32>
    %22 = vector.shape_cast %21 : vector<2x1xf32> to vector<2x1x1xf32>
    %23 = vector.broadcast %12 : f32 to vector<2x1x1xf32>
    %24 = arith.addf %22, %23 : vector<2x1x1xf32>
    %cst_18 = arith.constant 0.000000e+00 : f32
    %25 = vector.broadcast %cst_18 : f32 to vector<2x1x1xf32>
    %26 = arith.maximumf %24, %25 : vector<2x1x1xf32>
    %27 = vector.broadcast %26 : vector<2x1x1xf32> to vector<2x32x1xf32>
    %28 = vector.broadcast %8 : vector<1x32x1xf32> to vector<2x32x1xf32>
    %29 = arith.mulf %27, %28 : vector<2x32x1xf32>
    %30 = vector.broadcast %15 : vector<1x32x1xf32> to vector<2x32x1xf32>
    %31 = arith.addf %30, %29 : vector<2x32x1xf32>
    %32 = vector.broadcast %5 : vector<1x32x256xf32> to vector<2x32x256xf32>
    %33 = arith.mulf %16, %32 : vector<2x32x256xf32>
    %cst_19 = arith.constant dense<0.000000e+00> : vector<2x32xf32>
    %34 = vector.multi_reduction <add>, %33, %cst_19 [2] : vector<2x32x256xf32> to vector<2x32xf32>
    %35 = vector.shape_cast %34 : vector<2x32xf32> to vector<2x32x1xf32>
    %cst_20 = arith.constant dense<0.000000e+00> : vector<2x1xf32>
    %36 = vector.multi_reduction <add>, %35, %cst_20 [1] : vector<2x32x1xf32> to vector<2x1xf32>
    %37 = vector.shape_cast %36 : vector<2x1xf32> to vector<2x1x1xf32>
    %38 = vector.broadcast %13 : f32 to vector<2x1x1xf32>
    %39 = arith.addf %37, %38 : vector<2x1x1xf32>
    %cst_21 = arith.constant 0.000000e+00 : f32
    %40 = vector.broadcast %cst_21 : f32 to vector<2x1x1xf32>
    %41 = arith.maximumf %39, %40 : vector<2x1x1xf32>
    %42 = vector.broadcast %41 : vector<2x1x1xf32> to vector<2x32x1xf32>
    %43 = vector.broadcast %11 : vector<1x32x1xf32> to vector<2x32x1xf32>
    %44 = arith.mulf %42, %43 : vector<2x32x1xf32>
    %45 = arith.addf %31, %44 : vector<2x32x1xf32>
    %46 = arith.negf %45 : vector<2x32x1xf32>
    %47 = math.exp %46 : vector<2x32x1xf32>
    %cst_22 = arith.constant 1.000000e+00 : f32
    %48 = vector.broadcast %cst_22 : f32 to vector<2x32x1xf32>
    %49 = arith.addf %48, %47 : vector<2x32x1xf32>
    %50 = arith.divf %48, %49 : vector<2x32x1xf32>
    %51 = vector.broadcast %50 : vector<2x32x1xf32> to vector<2x32x256xf32>
    %52 = arith.mulf %16, %51 : vector<2x32x256xf32>
    %c0_23 = arith.constant 0 : index
    %c0_24 = arith.constant 0 : index
    %c0_25 = arith.constant 0 : index
    %53 = vector.load %arg6[%c0_23, %c0_24, %c0_25] : memref<2x32x256xf32, #tpu.memory_space<vmem>>, vector<2x32x256xf32>
    tpu.vector_store %arg6[%c0_23, %c0_24, %c0_25], %52 {strides = array<i32>} : memref<2x32x256xf32, #tpu.memory_space<vmem>>, vector<2x32x256xf32>,
    return
  }
  func.func @transform_0(%arg0: i32) -> (i32, i32, i32) {
    %c0_i32 = arith.constant 0 : i32
    %c0_i32_0 = arith.constant 0 : i32
    %c0_i32_1 = arith.constant 0 : i32
    return %arg0, %c0_i32, %c0_i32_0 : i32, i32, i32
  }
  func.func @transform_1(%arg0: i32) -> (i32, i32, i32) {
    %c0_i32 = arith.constant 0 : i32
    %c0_i32_0 = arith.constant 0 : i32
    %c0_i32_1 = arith.constant 0 : i32
    %c0_i32_2 = arith.constant 0 : i32
    return %c0_i32, %c0_i32_0, %c0_i32_1 : i32, i32, i32
  }
  func.func @transform_2(%arg0: i32) -> i32 {
    %c0_i32 = arith.constant 0 : i32
    %c0_i32_0 = arith.constant 0 : i32
    return %c0_i32 : i32
  }
  func.func @transform_3(%arg0: i32) -> (i32, i32, i32) {
    %c0_i32 = arith.constant 0 : i32
    %c0_i32_0 = arith.constant 0 : i32
    %c0_i32_1 = arith.constant 0 : i32
    %c0_i32_2 = arith.constant 0 : i32
    return %c0_i32, %c0_i32_0, %c0_i32_1 : i32, i32, i32
  }
  func.func @transform_4(%arg0: i32) -> (i32, i32) {
    %c0_i32 = arith.constant 0 : i32
    %c0_i32_0 = arith.constant 0 : i32
    %c0_i32_1 = arith.constant 0 : i32
    return %c0_i32, %c0_i32_0 : i32, i32
  }
  func.func @transform_5(%arg0: i32) -> (i32, i32, i32) {
    %c0_i32 = arith.constant 0 : i32
    %c0_i32_0 = arith.constant 0 : i32
    %c0_i32_1 = arith.constant 0 : i32
    return %arg0, %c0_i32, %c0_i32_0 : i32, i32, i32
  }
}

</mosaic_0001>

<llo_original>
// kernel: tpu_custom_call.1
$region0: #{tpu_custom_call.1}
  #allocation0 [shape = 'u32[]', space=smem, size = 0x4, offset = 0x4, fixed_abs, tag = 'smem constant byte address 0x4 - core index']
  #allocation1 [shape = 'u32[72,128]{1,0:T(1,128)}', space=vmem, size = 0x9000, scoped, tag = 'internal scratch']
  %s0 = inlined_call_operand.hbm [shape: f32[2,32,256], index: 0, kind: input, shape index: {}]
  %s1 = inlined_call_operand.hbm [shape: f32[2,32,256], index: 1, kind: input, shape index: {}]
  %s2 = inlined_call_operand.vmem [shape: f32[2], index: 2, kind: input, shape index: {}]
  %s3 = inlined_call_operand.vmem [shape: f32[2,32,1], index: 3, kind: input, shape index: {}]
  %s4 = inlined_call_operand.vmem [shape: f32[32,1], index: 4, kind: input, shape index: {}]
  %s5 = inlined_call_operand.hbm [shape: f32[2,32,256], index: 5, kind: output, shape index: {}]
  %s6 = sld [smem:[#allocation0]]
  $region42: #{tpu_custom_call.1} parent=0
    _
  %s8 = ssub.s32 1, %s6
  %s9 = scalar_select 0, %s8, %s6
  $region1: #{tpu_custom_call.1} parent=0
    #allocation2 [shape = 'u8[65536]{0}', space=vmem, size = 0x10000, scoped, tag = 'input window, operand 0, single buffered']
    #allocation3 [shape = 's32[1]{0}', space=sflag, size = 0x4, scoped, tag = 'scoped memory for tpu_custom_call.1']
    #allocation4 [shape = 's32[1]{0}', space=sflag, size = 0x4, scoped, tag = 'scoped memory for tpu_custom_call.1']
    #allocation5 [shape = 's32[1]{0}', space=sflag, size = 0x4, scoped, tag = 'scoped memory for tpu_custom_call.1']
    #allocation6 [shape = 'u8[65536]{0}', space=vmem, size = 0x10000, scoped, tag = 'input window, operand 1, single buffered']
    #allocation7 [shape = 's32[1]{0}', space=sflag, size = 0x4, scoped, tag = 'scoped memory for tpu_custom_call.1']
    #allocation8 [shape = 'u8[512]{0}', space=smem, size = 0x200, scoped, tag = 'input window, operand 2, single buffered']
    #allocation9 [shape = 'u8[65536]{0}', space=vmem, size = 0x10000, scoped, tag = 'output window, operand 0, single buffered']
    %10 = vsyncpa [#allocation3], 0
    %11 = vsyncpa [#allocation7], 0
    %12 = vsyncpa [#allocation5], 0
    %13 = vsyncpa [#allocation4], 0
    // Predicated region
    $region2: #{tpu_custom_call.1} parent=1 // pred_check
      _
    $region3: #{tpu_custom_call.1} parent=1 // pred_check_branch
      %15 = sbr.rel (0) target = $region5
    $region4: #{tpu_custom_call.1} parent=1 // pred_region
      %17 = vsyncadd [#allocation3], 0
      %s18 = sshll.u32 %s0, 4
      %s19 = int_to_ptr.hbm [resolvable:$true] %s18
      %s20 = sshll.u32 [#allocation2], 4
      %s21 = int_to_ptr.vmem [resolvable:$true] %s20
      %26 = dma.hbm_to_vmem [thread:$0]  %s19, 2048, %s21, [#allocation3], 256, 256, 16
    $region5: #{tpu_custom_call.1} parent=1 // pred_fallthru
      _
    // Predicated region
    $region6: #{tpu_custom_call.1} parent=1 // pred_check
      _
    $region7: #{tpu_custom_call.1} parent=1 // pred_check_branch
      %28 = sbr.rel (0) target = $region9
    $region8: #{tpu_custom_call.1} parent=1 // pred_region
      %30 = vsyncadd [#allocation7], 0
      %s31 = sshll.u32 %s1, 4
      %s32 = int_to_ptr.hbm [resolvable:$true] %s31
      %s33 = sshll.u32 [#allocation6], 4
      %s34 = int_to_ptr.vmem [resolvable:$true] %s33
      %39 = dma.hbm_to_vmem [thread:$0]  %s32, 2048, %s34, [#allocation7], 256, 256, 16
    $region9: #{tpu_custom_call.1} parent=1 // pred_fallthru
      _
    // Predicated region
    $region10: #{tpu_custom_call.1} parent=1 // pred_check
      _
    $region11: #{tpu_custom_call.1} parent=1 // pred_check_branch
      %41 = sbr.rel (0) target = $region13
    $region12: #{tpu_custom_call.1} parent=1 // pred_region
      %43 = vsyncadd [#allocation5], 0
      %s45 = sshll.u32 %s2, 4
      %s46 = int_to_ptr.vmem [resolvable:$true] %s45
      %48 = dma.vmem_to_smem %s46, 16, [#allocation8], [#allocation5]
    $region13: #{tpu_custom_call.1} parent=1 // pred_fallthru
      _
    // Predicated region
    $region14: #{tpu_custom_call.1} parent=1 // pred_check
      _
    $region15: #{tpu_custom_call.1} parent=1 // pred_check_branch
      %50 = sbr.rel (0) target = $region17
    $region16: #{tpu_custom_call.1} parent=1 // pred_region
      _
    $region17: #{tpu_custom_call.1} parent=1 // pred_fallthru
      _
    // Predicated region
    $region18: #{tpu_custom_call.1} parent=1 // pred_check
      _
    $region19: #{tpu_custom_call.1} parent=1 // pred_check_branch
      %52 = sbr.rel (0) target = $region21
    $region20: #{tpu_custom_call.1} parent=1 // pred_region
      _
    $region21: #{tpu_custom_call.1} parent=1 // pred_fallthru
      _
    // Predicated region
    $region22: #{tpu_custom_call.1} parent=1 // pred_check
      _
    $region23: #{tpu_custom_call.1} parent=1 // pred_check_branch
      %54 = sbr.rel (0) target = $region25
    $region24: #{tpu_custom_call.1} parent=1 // pred_region
      %56 = dma.done [#allocation3], 2048
    $region25: #{tpu_custom_call.1} parent=1 // pred_fallthru
      _
    // Predicated region
    $region26: #{tpu_custom_call.1} parent=1 // pred_check
      _
    $region27: #{tpu_custom_call.1} parent=1 // pred_check_branch
      %58 = sbr.rel (0) target = $region29
    $region28: #{tpu_custom_call.1} parent=1 // pred_region
      %60 = dma.done [#allocation7], 2048
    $region29: #{tpu_custom_call.1} parent=1 // pred_fallthru
      _
    // Predicated region
    $region30: #{tpu_custom_call.1} parent=1 // pred_check
      _
    $region31: #{tpu_custom_call.1} parent=1 // pred_check_branch
      %62 = sbr.rel (0) target = $region33
    $region32: #{tpu_custom_call.1} parent=1 // pred_region
      %64 = dma.done [#allocation5], 16
    $region33: #{tpu_custom_call.1} parent=1 // pred_fallthru
      _
    %65 = sfence
    %v66 = vld [vmem:[#allocation6] sm:$0xff]
    %v67 = vld [vmem:[#allocation6 + $0x8] sm:$0xff]
    %v68 = vld [vmem:[#allocation6 + $0x10] sm:$0xff]
    %v69 = vld [vmem:[#allocation6 + $0x18] sm:$0xff]
    %v70 = vld [vmem:[#allocation6 + $0x20] sm:$0xff]
    %v71 = vld [vmem:[#allocation6 + $0x28] sm:$0xff]
    %v72 = vld [vmem:[#allocation6 + $0x30] sm:$0xff]
    %v73 = vld [vmem:[#allocation6 + $0x38] sm:$0xff]
    %s74 = scalar_lea.vmem [#allocation6], 64
    %v75 = vld [vmem:[%s74] sm:$0xff]
    %v76 = vld [vmem:[%s74 + $0x8] sm:$0xff]
    %v77 = vld [vmem:[%s74 + $0x10] sm:$0xff]
    %v78 = vld [vmem:[%s74 + $0x18] sm:$0xff]
    %v79 = vld [vmem:[%s74 + $0x20] sm:$0xff]
    %v80 = vld [vmem:[%s74 + $0x28] sm:$0xff]
    %v81 = vld [vmem:[%s74 + $0x30] sm:$0xff]
    %v82 = vld [vmem:[%s74 + $0x38] sm:$0xff]
    %v83 = vld [vmem:[%s3] sm:$0xff]
    %v84 = vld [vmem:[%s3 + $0x8] sm:$0xff]
    %v85 = vld [vmem:[%s3 + $0x10] sm:$0xff]
    %v86 = vld [vmem:[%s3 + $0x18] sm:$0xff]
    %s87 = scalar_lea.vmem %s3, 32
    %v88 = vld [vmem:[%s87] sm:$0xff]
    %v89 = vld [vmem:[%s87 + $0x8] sm:$0xff]
    %v90 = vld [vmem:[%s87 + $0x10] sm:$0xff]
    %v91 = vld [vmem:[%s87 + $0x18] sm:$0xff]
    %s92 = sld [smem:[#allocation8]]
    %s93 = sld [smem:[#allocation8 + $0x1]]
    %v94 = vld [vmem:[%s4] sm:$0xff]
    %v95 = vld [vmem:[%s4 + $0x8] sm:$0xff]
    %v96 = vld [vmem:[%s4 + $0x10] sm:$0xff]
    %v97 = vld [vmem:[%s4 + $0x18] sm:$0xff]
    %v98 = vld [vmem:[#allocation2] sm:$0xff]
    %v99 = vld [vmem:[#allocation2 + $0x8] sm:$0xff]
    %v100 = vld [vmem:[#allocation2 + $0x10] sm:$0xff]
    %v101 = vld [vmem:[#allocation2 + $0x18] sm:$0xff]
    %v102 = vld [vmem:[#allocation2 + $0x20] sm:$0xff]
    %v103 = vld [vmem:[#allocation2 + $0x28] sm:$0xff]
    %v104 = vld [vmem:[#allocation2 + $0x30] sm:$0xff]
    %v105 = vld [vmem:[#allocation2 + $0x38] sm:$0xff]
    %v106 = vld [vmem:[#allocation2 + $0x40] sm:$0xff]
    %v107 = vld [vmem:[#allocation2 + $0x48] sm:$0xff]
    %v108 = vld [vmem:[#allocation2 + $0x50] sm:$0xff]
    %v109 = vld [vmem:[#allocation2 + $0x58] sm:$0xff]
    %v110 = vld [vmem:[#allocation2 + $0x60] sm:$0xff]
    %v111 = vld [vmem:[#allocation2 + $0x68] sm:$0xff]
    %v112 = vld [vmem:[#allocation2 + $0x70] sm:$0xff]
    %v113 = vld [vmem:[#allocation2 + $0x78] sm:$0xff]
    %v114 = vmul.f32 %v98, %v66
    %v115 = vmul.f32 %v99, %v67
    %v116 = vmul.f32 %v100, %v68
    %v117 = vmul.f32 %v101, %v69
    %v118 = vmul.f32 %v102, %v70
    %v119 = vmul.f32 %v103, %v71
    %v120 = vmul.f32 %v104, %v72
    %v121 = vmul.f32 %v105, %v73
    %v122 = vmul.f32 %v106, %v66
    %v123 = vmul.f32 %v107, %v67
    %v124 = vmul.f32 %v108, %v68
    %v125 = vmul.f32 %v109, %v69
    %v126 = vmul.f32 %v110, %v70
    %v127 = vmul.f32 %v111, %v71
    %v128 = vmul.f32 %v112, %v72
    %v129 = vmul.f32 %v113, %v73
    %v130 = vadd.f32 %v114, %v115
    %131 = vadd.xlane.f32.xlu0 %v130
    %v132 = vpop.xlane.xlu0 %131
    %v133 = vadd.f32 %v116, %v117
    %134 = vadd.xlane.f32.xlu0 %v133
    %v135 = vpop.xlane.xlu0 %134
    %v136 = vadd.f32 %v118, %v119
    %137 = vadd.xlane.f32.xlu0 %v136
    %v138 = vpop.xlane.xlu0 %137
    %v139 = vadd.f32 %v120, %v121
    %140 = vadd.xlane.f32.xlu0 %v139
    %v141 = vpop.xlane.xlu0 %140
    %v142 = vadd.f32 %v122, %v123
    %143 = vadd.xlane.f32.xlu0 %v142
    %v144 = vpop.xlane.xlu0 %143
    %v145 = vadd.f32 %v124, %v125
    %146 = vadd.xlane.f32.xlu0 %v145
    %v147 = vpop.xlane.xlu0 %146
    %v148 = vadd.f32 %v126, %v127
    %149 = vadd.xlane.f32.xlu0 %v148
    %v150 = vpop.xlane.xlu0 %149
    %v151 = vadd.f32 %v128, %v129
    %152 = vadd.xlane.f32.xlu0 %v151
    %v153 = vpop.xlane.xlu0 %152
    %v154 = vadd.f32 %v132, %v135
    %v155 = vadd.f32 %v154, %v138
    %v156 = vadd.f32 %v155, %v141
    %v157 = vrot.slane %v156, 4
    %v158 = vadd.f32 %v156, %v157
    %v159 = vrot.slane %v158, 2
    %v160 = vadd.f32 %v158, %v159
    %v161 = vrot.slane %v160, 1
    %v162 = vadd.f32 %v160, %v161
    %v163 = vadd.f32 %v144, %v147
    %v164 = vadd.f32 %v163, %v150
    %v165 = vadd.f32 %v164, %v153
    %v166 = vrot.slane %v165, 4
    %v167 = vadd.f32 %v165, %v166
    %v168 = vrot.slane %v167, 2
    %v169 = vadd.f32 %v167, %v168
    %v170 = vrot.slane %v169, 1
    %v171 = vadd.f32 %v169, %v170
    %v172 = vstv %s92
    %v173 = vadd.f32 %v162, %v172
    %v174 = vadd.f32 %v171, %v172
    %v175 = vmax.f32 %v173, 0.0
    %v176 = vmax.f32 %v174, 0.0
    %v177 = vmul.f32 %v175, %v83
    %v178 = vmul.f32 %v175, %v84
    %v179 = vmul.f32 %v175, %v85
    %v180 = vmul.f32 %v175, %v86
    %v181 = vmul.f32 %v176, %v83
    %v182 = vmul.f32 %v176, %v84
    %v183 = vmul.f32 %v176, %v85
    %v184 = vmul.f32 %v176, %v86
    %v185 = vadd.f32 %v94, %v177
    %v186 = vadd.f32 %v95, %v178
    %v187 = vadd.f32 %v96, %v179
    %v188 = vadd.f32 %v97, %v180
    %v189 = vadd.f32 %v94, %v181
    %v190 = vadd.f32 %v95, %v182
    %v191 = vadd.f32 %v96, %v183
    %v192 = vadd.f32 %v97, %v184
    %v193 = vmul.f32 %v98, %v75
    %v194 = vmul.f32 %v99, %v76
    %v195 = vmul.f32 %v100, %v77
    %v196 = vmul.f32 %v101, %v78
    %v197 = vmul.f32 %v102, %v79
    %v198 = vmul.f32 %v103, %v80
    %v199 = vmul.f32 %v104, %v81
    %v200 = vmul.f32 %v105, %v82
    %v201 = vmul.f32 %v106, %v75
    %v202 = vmul.f32 %v107, %v76
    %v203 = vmul.f32 %v108, %v77
    %v204 = vmul.f32 %v109, %v78
    %v205 = vmul.f32 %v110, %v79
    %v206 = vmul.f32 %v111, %v80
    %v207 = vmul.f32 %v112, %v81
    %v208 = vmul.f32 %v113, %v82
    %v209 = vadd.f32 %v193, %v194
    %210 = vadd.xlane.f32.xlu0 %v209
    %v211 = vpop.xlane.xlu0 %210
    %v212 = vadd.f32 %v195, %v196
    %213 = vadd.xlane.f32.xlu0 %v212
    %v214 = vpop.xlane.xlu0 %213
    %v215 = vadd.f32 %v197, %v198
    %216 = vadd.xlane.f32.xlu0 %v215
    %v217 = vpop.xlane.xlu0 %216
    %v218 = vadd.f32 %v199, %v200
    %219 = vadd.xlane.f32.xlu0 %v218
    %v220 = vpop.xlane.xlu0 %219
    %v221 = vadd.f32 %v201, %v202
    %222 = vadd.xlane.f32.xlu0 %v221
    %v223 = vpop.xlane.xlu0 %222
    %v224 = vadd.f32 %v203, %v204
    %225 = vadd.xlane.f32.xlu0 %v224
    %v226 = vpop.xlane.xlu0 %225
    %v227 = vadd.f32 %v205, %v206
    %228 = vadd.xlane.f32.xlu0 %v227
    %v229 = vpop.xlane.xlu0 %228
    %v230 = vadd.f32 %v207, %v208
    %231 = vadd.xlane.f32.xlu0 %v230
    %v232 = vpop.xlane.xlu0 %231
    %v233 = vadd.f32 %v211, %v214
    %v234 = vadd.f32 %v233, %v217
    %v235 = vadd.f32 %v234, %v220
    %v236 = vrot.slane %v235, 4
    %v237 = vadd.f32 %v235, %v236
    %v238 = vrot.slane %v237, 2
    %v239 = vadd.f32 %v237, %v238
    %v240 = vrot.slane %v239, 1
    %v241 = vadd.f32 %v239, %v240
    %v242 = vadd.f32 %v223, %v226
    %v243 = vadd.f32 %v242, %v229
    %v244 = vadd.f32 %v243, %v232
    %v245 = vrot.slane %v244, 4
    %v246 = vadd.f32 %v244, %v245
    %v247 = vrot.slane %v246, 2
    %v248 = vadd.f32 %v246, %v247
    %v249 = vrot.slane %v248, 1
    %v250 = vadd.f32 %v248, %v249
    %v251 = vstv %s93
    %v252 = vadd.f32 %v241, %v251
    %v253 = vadd.f32 %v250, %v251
    %v254 = vmax.f32 %v252, 0.0
    %v255 = vmax.f32 %v253, 0.0
    %v256 = vmul.f32 %v254, %v88
    %v257 = vmul.f32 %v254, %v89
    %v258 = vmul.f32 %v254, %v90
    %v259 = vmul.f32 %v254, %v91
    %v260 = vmul.f32 %v255, %v88
    %v261 = vmul.f32 %v255, %v89
    %v262 = vmul.f32 %v255, %v90
    %v263 = vmul.f32 %v255, %v91
    %v264 = vadd.f32 %v185, %v256
    %v265 = vadd.f32 %v186, %v257
    %v266 = vadd.f32 %v187, %v258
    %v267 = vadd.f32 %v188, %v259
    %v268 = vadd.f32 %v189, %v260
    %v269 = vadd.f32 %v190, %v261
    %v270 = vadd.f32 %v191, %v262
    %v271 = vadd.f32 %v192, %v263
    %v272 = vxor.u32 %v264, 2147483648
    %v273 = vxor.u32 %v265, 2147483648
    %v274 = vxor.u32 %v266, 2147483648
    %v275 = vxor.u32 %v267, 2147483648
    %v276 = vxor.u32 %v268, 2147483648
    %v277 = vxor.u32 %v269, 2147483648
    %v278 = vxor.u32 %v270, 2147483648
    %v279 = vxor.u32 %v271, 2147483648
    %v280 = vmul.f32 %v272, 1.442695
    %v281 = vpow.pop %v280
    %v282 = vmul.f32 %v273, 1.442695
    %v283 = vpow.pop %v282
    %v284 = vmul.f32 %v274, 1.442695
    %v285 = vpow.pop %v284
    %v286 = vmul.f32 %v275, 1.442695
    %v287 = vpow.pop %v286
    %v288 = vmul.f32 %v276, 1.442695
    %v289 = vpow.pop %v288
    %v290 = vmul.f32 %v277, 1.442695
    %v291 = vpow.pop %v290
    %v292 = vmul.f32 %v278, 1.442695
    %v293 = vpow.pop %v292
    %v294 = vmul.f32 %v279, 1.442695
    %v295 = vpow.pop %v294
    %v296 = vadd.f32 %v281, 1.0
    %v297 = vadd.f32 %v283, 1.0
    %v298 = vadd.f32 %v285, 1.0
    %v299 = vadd.f32 %v287, 1.0
    %v300 = vadd.f32 %v289, 1.0
    %v301 = vadd.f32 %v291, 1.0
    %v302 = vadd.f32 %v293, 1.0
    %v303 = vadd.f32 %v295, 1.0
    %v304 = vrcp.pop %v296
    %v305 = vmul.f32 %v296, %v304
    %v306 = vsub.f32 1.0, %v305
    %v307 = vmul.f32 %v304, %v306
    %v308 = vadd.f32 %v304, %v307
    %vm309 = vweird.f32 %v296
    %vm310 = vweird.f32 %v304
    %vm311 = vmor %vm309, %vm310
    %v312 = vsel %vm311, %v304, %v308
    %v313 = vand.u32 2147483647, %v296
    %vm314 = vcmp.eq.f32.partialorder %v313, 8.507059e+37
    %v315 = vand.u32 %v296, 2147483648
    %v316 = vor.u32 1.1754944e-38, %v315
    %v317 = vsel %vm314, %v316, %v312
    %v318 = vmul.f32 1.0, %v317
    %v319 = vrcp.pop %v297
    %v320 = vmul.f32 %v297, %v319
    %v321 = vsub.f32 1.0, %v320
    %v322 = vmul.f32 %v319, %v321
    %v323 = vadd.f32 %v319, %v322
    %vm324 = vweird.f32 %v297
    %vm325 = vweird.f32 %v319
    %vm326 = vmor %vm324, %vm325
    %v327 = vsel %vm326, %v319, %v323
    %v328 = vand.u32 2147483647, %v297
    %vm329 = vcmp.eq.f32.partialorder %v328, 8.507059e+37
    %v330 = vand.u32 %v297, 2147483648
    %v331 = vor.u32 1.1754944e-38, %v330
    %v332 = vsel %vm329, %v331, %v327
    %v333 = vmul.f32 1.0, %v332
    %v334 = vrcp.pop %v298
    %v335 = vmul.f32 %v298, %v334
    %v336 = vsub.f32 1.0, %v335
    %v337 = vmul.f32 %v334, %v336
    %v338 = vadd.f32 %v334, %v337
    %vm339 = vweird.f32 %v298
    %vm340 = vweird.f32 %v334
    %vm341 = vmor %vm339, %vm340
    %v342 = vsel %vm341, %v334, %v338
    %v343 = vand.u32 2147483647, %v298
    %vm344 = vcmp.eq.f32.partialorder %v343, 8.507059e+37
    %v345 = vand.u32 %v298, 2147483648
    %v346 = vor.u32 1.1754944e-38, %v345
    %v347 = vsel %vm344, %v346, %v342
    %v348 = vmul.f32 1.0, %v347
    %v349 = vrcp.pop %v299
    %v350 = vmul.f32 %v299, %v349
    %v351 = vsub.f32 1.0, %v350
    %v352 = vmul.f32 %v349, %v351
    %v353 = vadd.f32 %v349, %v352
    %vm354 = vweird.f32 %v299
    %vm355 = vweird.f32 %v349
    %vm356 = vmor %vm354, %vm355
    %v357 = vsel %vm356, %v349, %v353
    %v358 = vand.u32 2147483647, %v299
    %vm359 = vcmp.eq.f32.partialorder %v358, 8.507059e+37
    %v360 = vand.u32 %v299, 2147483648
    %v361 = vor.u32 1.1754944e-38, %v360
    %v362 = vsel %vm359, %v361, %v357
    %v363 = vmul.f32 1.0, %v362
    %v364 = vrcp.pop %v300
    %v365 = vmul.f32 %v300, %v364
    %v366 = vsub.f32 1.0, %v365
    %v367 = vmul.f32 %v364, %v366
    %v368 = vadd.f32 %v364, %v367
    %vm369 = vweird.f32 %v300
    %vm370 = vweird.f32 %v364
    %vm371 = vmor %vm369, %vm370
    %v372 = vsel %vm371, %v364, %v368
    %v373 = vand.u32 2147483647, %v300
    %vm374 = vcmp.eq.f32.partialorder %v373, 8.507059e+37
    %v375 = vand.u32 %v300, 2147483648
    %v376 = vor.u32 1.1754944e-38, %v375
    %v377 = vsel %vm374, %v376, %v372
    %v378 = vmul.f32 1.0, %v377
    %v379 = vrcp.pop %v301
    %v380 = vmul.f32 %v301, %v379
    %v381 = vsub.f32 1.0, %v380
    %v382 = vmul.f32 %v379, %v381
    %v383 = vadd.f32 %v379, %v382
    %vm384 = vweird.f32 %v301
    %vm385 = vweird.f32 %v379
    %vm386 = vmor %vm384, %vm385
    %v387 = vsel %vm386, %v379, %v383
    %v388 = vand.u32 2147483647, %v301
    %vm389 = vcmp.eq.f32.partialorder %v388, 8.507059e+37
    %v390 = vand.u32 %v301, 2147483648
    %v391 = vor.u32 1.1754944e-38, %v390
    %v392 = vsel %vm389, %v391, %v387
    %v393 = vmul.f32 1.0, %v392
    %v394 = vrcp.pop %v302
    %v395 = vmul.f32 %v302, %v394
    %v396 = vsub.f32 1.0, %v395
    %v397 = vmul.f32 %v394, %v396
    %v398 = vadd.f32 %v394, %v397
    %vm399 = vweird.f32 %v302
    %vm400 = vweird.f32 %v394
    %vm401 = vmor %vm399, %vm400
    %v402 = vsel %vm401, %v394, %v398
    %v403 = vand.u32 2147483647, %v302
    %vm404 = vcmp.eq.f32.partialorder %v403, 8.507059e+37
    %v405 = vand.u32 %v302, 2147483648
    %v406 = vor.u32 1.1754944e-38, %v405
    %v407 = vsel %vm404, %v406, %v402
    %v408 = vmul.f32 1.0, %v407
    %v409 = vrcp.pop %v303
    %v410 = vmul.f32 %v303, %v409
    %v411 = vsub.f32 1.0, %v410
    %v412 = vmul.f32 %v409, %v411
    %v413 = vadd.f32 %v409, %v412
    %vm414 = vweird.f32 %v303
    %vm415 = vweird.f32 %v409
    %vm416 = vmor %vm414, %vm415
    %v417 = vsel %vm416, %v409, %v413
    %v418 = vand.u32 2147483647, %v303
    %vm419 = vcmp.eq.f32.partialorder %v418, 8.507059e+37
    %v420 = vand.u32 %v303, 2147483648
    %v421 = vor.u32 1.1754944e-38, %v420
    %v422 = vsel %vm419, %v421, %v417
    %v423 = vmul.f32 1.0, %v422
    %425 = vset.pattern.permute.xlu0 0
    %426 = vperm.xlu0 %425, %v318
    %v427 = vpop.permute.xlu0 %426
    %430 = vset.pattern.permute.xlu0 0
    %431 = vperm.xlu0 %430, %v333
    %v432 = vpop.permute.xlu0 %431
    %435 = vset.pattern.permute.xlu0 0
    %436 = vperm.xlu0 %435, %v348
    %v437 = vpop.permute.xlu0 %436
    %440 = vset.pattern.permute.xlu0 0
    %441 = vperm.xlu0 %440, %v363
    %v442 = vpop.permute.xlu0 %441
    %445 = vset.pattern.permute.xlu0 0
    %446 = vperm.xlu0 %445, %v378
    %v447 = vpop.permute.xlu0 %446
    %450 = vset.pattern.permute.xlu0 0
    %451 = vperm.xlu0 %450, %v393
    %v452 = vpop.permute.xlu0 %451
    %455 = vset.pattern.permute.xlu0 0
    %456 = vperm.xlu0 %455, %v408
    %v457 = vpop.permute.xlu0 %456
    %460 = vset.pattern.permute.xlu0 0
    %461 = vperm.xlu0 %460, %v423
    %v462 = vpop.permute.xlu0 %461
    %v464 = vmul.f32 %v98, %v427
    %v465 = vmul.f32 %v99, %v427
    %v466 = vmul.f32 %v100, %v432
    %v467 = vmul.f32 %v101, %v432
    %v468 = vmul.f32 %v102, %v437
    %v469 = vmul.f32 %v103, %v437
    %v470 = vmul.f32 %v104, %v442
    %v471 = vmul.f32 %v105, %v442
    %v472 = vmul.f32 %v106, %v447
    %v473 = vmul.f32 %v107, %v447
    %v474 = vmul.f32 %v108, %v452
    %v475 = vmul.f32 %v109, %v452
    %v476 = vmul.f32 %v110, %v457
    %v477 = vmul.f32 %v111, %v457
    %v478 = vmul.f32 %v112, %v462
    %v479 = vmul.f32 %v113, %v462
    %480 = vst [vmem:[#allocation9] sm:$0xff] %v464
    %481 = vst [vmem:[#allocation9 + $0x8] sm:$0xff] %v465
    %482 = vst [vmem:[#allocation9 + $0x10] sm:$0xff] %v466
    %483 = vst [vmem:[#allocation9 + $0x18] sm:$0xff] %v467
    %484 = vst [vmem:[#allocation9 + $0x20] sm:$0xff] %v468
    %485 = vst [vmem:[#allocation9 + $0x28] sm:$0xff] %v469
    %486 = vst [vmem:[#allocation9 + $0x30] sm:$0xff] %v470
    %487 = vst [vmem:[#allocation9 + $0x38] sm:$0xff] %v471
    %488 = vst [vmem:[#allocation9 + $0x40] sm:$0xff] %v472
    %489 = vst [vmem:[#allocation9 + $0x48] sm:$0xff] %v473
    %490 = vst [vmem:[#allocation9 + $0x50] sm:$0xff] %v474
    %491 = vst [vmem:[#allocation9 + $0x58] sm:$0xff] %v475
    %492 = vst [vmem:[#allocation9 + $0x60] sm:$0xff] %v476
    %493 = vst [vmem:[#allocation9 + $0x68] sm:$0xff] %v477
    %494 = vst [vmem:[#allocation9 + $0x70] sm:$0xff] %v478
    %495 = vst [vmem:[#allocation9 + $0x78] sm:$0xff] %v479
    // Predicated region
    $region34: #{tpu_custom_call.1} parent=1 // pred_check
      _
    $region35: #{tpu_custom_call.1} parent=1 // pred_check_branch
      %497 = sbr.rel (0) target = $region37
    $region36: #{tpu_custom_call.1} parent=1 // pred_region
      %499 = vsyncadd [#allocation4], 0
      %s500 = sshll.u32 [#allocation9], 4
      %s501 = int_to_ptr.vmem [resolvable:$true] %s500
      %s502 = sshll.u32 %s5, 4
      %s503 = int_to_ptr.hbm [resolvable:$true] %s502
      %508 = dma.vmem_to_hbm [thread:$0]  %s501, 2048, %s503, [#allocation4], 256, 256, 16
    $region37: #{tpu_custom_call.1} parent=1 // pred_fallthru
      _
    // Predicated region
    $region38: #{tpu_custom_call.1} parent=1 // pred_check
      _
    $region39: #{tpu_custom_call.1} parent=1 // pred_check_branch
      %510 = sbr.rel (0) target = $region41
    $region40: #{tpu_custom_call.1} parent=1 // pred_region
      %512 = dma.done [#allocation4], 2048
    $region41: #{tpu_custom_call.1} parent=1 // pred_fallthru
      _
    %513 = vsyncpa [#allocation3], 1
    %514 = vsyncpa [#allocation7], 1
    %515 = vsyncpa [#allocation4], 1
    %516 = vsyncpa [#allocation5], 1

</llo_original>
